<compile_context>
chip_gen: v7x
topology: tpu7x:2x2x1
jax: 0.10.0
libtpu: 0.0.40
codegen_flags: <defaults>
</compile_context>

<pallas_src>
import functools

import jax
import jax.numpy as jnp
from jax.experimental import pallas as pl
from jax.experimental.pallas import tpu as pltpu


def _round_up(v, m):
    return (v + m - 1) // m * m


def _vmem_capacity_bytes():
    try:
        return int(pltpu.get_tpu_info().vmem_capacity_bytes)
    except Exception:
        return 64 << 20  # conservative fallback (v7x per-TensorCore VMEM)


_VMEM_CAP = _vmem_capacity_bytes()
# ~70% of physical VMEM: ~45 MiB on v7x (64 MiB), ~90 MiB on v5e/v6e (128 MiB).
_VMEM_BUDGET = int(0.7 * _VMEM_CAP)


def _pick_tile(dim, pref, align):
    """Largest tile <= pref (multiple of `align`) with low padding waste."""
    if dim <= pref:
        return _round_up(dim, align)
    best_t, best_pad = align, _round_up(dim, align) - dim
    for t in range(pref, align - 1, -align):
        pad = _round_up(dim, t) - dim
        if pad * 8 <= dim:          # <= 12.5% waste: take the biggest such tile
            return t
        if pad < best_pad:
            best_t, best_pad = t, pad
    return best_t


def _tile_footprint_bytes(tm, tn, tk, x_bytes, w_bytes, out_bytes):
    # double-buffered x / W^T / c tiles + f32 accumulator scratch
    return 2 * (tm * tk * x_bytes + tk * tn * w_bytes + tm * tn * out_bytes) + tm * tn * 4


def _fit_tiles_to_budget(tm, tn, tk, x_bytes, w_bytes, out_bytes, budget):
    """Shrink (tk, tn, tm) until the double-buffered footprint fits `budget`."""
    while _tile_footprint_bytes(tm, tn, tk, x_bytes, w_bytes, out_bytes) > budget:
        if tk >= tn and tk >= tm and tk > 128:
            tk = max(128, (tk // 2) // 128 * 128)
        elif tn >= tm and tn > 128:
            tn = max(128, (tn // 2) // 128 * 128)
        elif tm > 8:
            tm = max(8, (tm // 2) // 8 * 8)
        else:
            break
    return tm, tn, tk


def _make_kernel(compute_dtype):
    def kernel(thr_ref, x_ref, wt_ref, c_ref, acc_ref):
        k = pl.program_id(2)

        thr = thr_ref[0]
        x = x_ref[...]
        # runtime-threshold pruning, kept in the input dtype (f32 VPU path on
        # every generation; no bf16 elementwise round-trips on v5e)
        x_masked = jnp.where(jnp.abs(x) >= thr, x, jnp.zeros_like(x))

        # pruned(x) @ W^T  ==  x_masked[tm, tk] @ wt[tk, tn]   (MXU, f32 acc)
        partial = jax.lax.dot_general(
            x_masked.astype(compute_dtype), wt_ref[...],
            dimension_numbers=(((1,), (0,)), ((), ())),
            preferred_element_type=jnp.float32,
        )

        @pl.when(k == 0)
        def _init():                     # first K step: write, don't zero+add
            acc_ref[...] = partial

        @pl.when(k != 0)
        def _accumulate():
            acc_ref[...] += partial

        @pl.when(k == pl.num_programs(2) - 1)
        def _flush():
            c_ref[...] = acc_ref[...].astype(c_ref.dtype)

    return kernel


def prepare_weight(weight, *, tm_pref=512, tn_pref=512, tk_pref=1024,
                   use_bf16_matmul=False):
    """One-time weight transform: transpose to [K, N], pad, optional bf16 cast.

    Call once at module init and cache the result -- NOT per forward call.
    Returns (wt_padded, tm_cap, tn, tk).
    """
    out_f, in_f = weight.shape
    tn = _pick_tile(out_f, tn_pref, 128)
    tk = _pick_tile(in_f, tk_pref, 128)

    w_dtype = jnp.bfloat16 if use_bf16_matmul else weight.dtype
    x_bytes = jnp.dtype(weight.dtype).itemsize      # x streams in its own dtype
    w_bytes = jnp.dtype(w_dtype).itemsize
    out_bytes = jnp.dtype(weight.dtype).itemsize
    tm_cap, tn, tk = _fit_tiles_to_budget(
        tm_pref, tn, tk, x_bytes, w_bytes, out_bytes, _VMEM_BUDGET)

    n_pad = _round_up(out_f, tn)
    k_pad = _round_up(in_f, tk)
    wt_p = jnp.pad(weight.T, ((0, k_pad - in_f), (0, n_pad - out_f))).astype(w_dtype)
    return wt_p, tm_cap, tn, tk


@functools.partial(jax.jit,
                   static_argnames=("out_features", "tm_pref", "tn", "tk"))
def debug_rtp_linear_prepared(x, wt_p, threshold, *,
                              out_features, tm_pref, tn, tk):
    """Forward pass with a pre-transposed / pre-padded weight (fast path).

    Returns (c, pruned_in_training, pruned_in_inference, total).
    """
    B, in_f = x.shape
    k_pad, n_pad = wt_p.shape

    tm = _pick_tile(B, tm_pref, 8)
    m_pad = _round_up(B, tm)
    mt, nt, kt = m_pad // tm, n_pad // tn, k_pad // tk

    x_p = jnp.pad(x, ((0, m_pad - B), (0, k_pad - in_f)))
    thr = jnp.asarray(threshold, dtype=jnp.float32).reshape((1,))

    footprint = _tile_footprint_bytes(
        tm, tn, tk,
        jnp.dtype(x.dtype).itemsize, jnp.dtype(wt_p.dtype).itemsize,
        jnp.dtype(x.dtype).itemsize)
    vmem_limit = int(min(_VMEM_BUDGET, max(footprint + (4 << 20), 32 << 20)))

    c_pad = pl.pallas_call(
        _make_kernel(wt_p.dtype),
        out_shape=jax.ShapeDtypeStruct((m_pad, n_pad), x.dtype),
        grid_spec=pltpu.PrefetchScalarGridSpec(
            num_scalar_prefetch=0,
            grid=(mt, nt, kt),
            in_specs=[
                pl.BlockSpec(memory_space=pltpu.MemorySpace.SMEM),   # threshold
                pl.BlockSpec((tm, tk), lambda i, j, k: (i, k)),      # x
                pl.BlockSpec((tk, tn), lambda i, j, k: (k, j)),      # W^T [K, N]
            ],
            out_specs=pl.BlockSpec((tm, tn), lambda i, j, k: (i, j)),
            scratch_shapes=[pltpu.VMEM((tm, tn), jnp.float32)],
        ),
        compiler_params=pltpu.CompilerParams(
            # stats live outside the kernel, so M and N tiles are fully
            # independent -> both "parallel" (v7x megacore can shard either);
            # K revisits the accumulator -> "arbitrary".
            dimension_semantics=("parallel", "parallel", "arbitrary"),
            vmem_limit_bytes=vmem_limit,
        ),
    )(thr, x_p, wt_p)

    c = c_pad[:B, :out_features]

    # Pruning statistics: one cheap XLA reduction over x, kept out of the
    # Pallas kernel so the matmul grid stays fully core-parallel on v7x.
    # TODO(synk): int32 stats overflow once B*in_features >= 2^31.
    pruned = jnp.sum(jnp.abs(x) < thr[0]).astype(jnp.int32)
    total = jnp.int32(B * in_f)
    # TODO(synk): rtp_core.debug_rtp_linear's exact split between the "training"
    # and "inference" pruning counters is not recoverable from the module
    # source; both report the thresholded-element count here.
    return c, pruned, pruned, total


def debug_rtp_linear(x, weight, threshold, *, tm_pref=512, tn_pref=512,
                     tk_pref=1024, use_bf16_matmul=False):
    """Convenience one-shot wrapper (prep + call).  For repeated forwards use
    DebugLinear / prepare_weight so the weight transform is paid only once."""
    wt_p, tm_cap, tn, tk = prepare_weight(
        weight, tm_pref=tm_pref, tn_pref=tn_pref, tk_pref=tk_pref,
        use_bf16_matmul=use_bf16_matmul)
    return debug_rtp_linear_prepared(
        x, wt_p, threshold, out_features=weight.shape[0],
        tm_pref=tm_cap, tn=tn, tk=tk)


class DebugLinear:
    """JAX mirror of the PyTorch DebugLinear module (buffers, no grads)."""

    def __init__(self, in_features, out_features, bias=True, *, key,
                 use_bf16_matmul=False, tm_pref=512, tn_pref=512, tk_pref=1024):
        self.in_features = in_features
        self.out_features = out_features
        k_w, k_b = jax.random.split(key)
        # torch registers empty buffers; use deterministic synthetic params
        self.weight = 0.1 * jax.random.normal(
            k_w, (out_features, in_features), dtype=jnp.float32)
        # bias buffer exists on the torch module but is never used in forward()
        self.bias = (0.1 * jax.random.normal(k_b, (out_features,), dtype=jnp.float32)
                     if bias else None)
        # one-time weight transpose + pad (+ optional bf16 cast), cached so the
        # per-call path never re-materializes W^T in HBM.
        self._wt_p, self._tm_cap, self._tn, self._tk = prepare_weight(
            self.weight, tm_pref=tm_pref, tn_pref=tn_pref, tk_pref=tk_pref,
            use_bf16_matmul=use_bf16_matmul)

    def forward(self, last_out, threshold, stats):
        c, p_tr, p_inf, total = debug_rtp_linear_prepared(
            last_out, self._wt_p, threshold,
            out_features=self.out_features, tm_pref=self._tm_cap,
            tn=self._tn, tk=self._tk)
        # accumulate on-device scalars; host sync only at logging/assert points
        stats['pruned_in_training'] = stats['pruned_in_training'] + p_tr
        stats['pruned_in_inference'] = stats['pruned_in_inference'] + p_inf
        stats['total'] = stats['total'] + total
        return c


if __name__ == "__main__":
    key = jax.random.PRNGKey(0)
    k_x, k_mod, k_x2, k_w2 = jax.random.split(key, 4)

    # ---- small module-level test (f32 MXU path, tight tolerance) ----
    batch, in_features, out_features = 8, 32, 16
    threshold = 0.5

    x = jax.random.normal(k_x, (batch, in_features), dtype=jnp.float32)
    mod = DebugLinear(in_features, out_features, bias=True, key=k_mod)

    stats = {'pruned_in_training': 0, 'pruned_in_inference': 0, 'total': 0}
    c = mod.forward(x, threshold, stats)
    c = jax.block_until_ready(c)

    keep_ref = jnp.abs(x) >= threshold
    c_ref = jnp.where(keep_ref, x, 0.0) @ mod.weight.T
    pruned_ref = int(jnp.sum(~keep_ref))

    assert jnp.allclose(c, c_ref, atol=1e-4, rtol=1e-4), "output mismatch (f32)"
    assert int(stats['pruned_in_training']) == pruned_ref, "pruned (train) mismatch"
    assert int(stats['pruned_in_inference']) == pruned_ref, "pruned (inf) mismatch"
    assert int(stats['total']) == batch * in_features, "total count mismatch"

    # ---- multi-tile / padding-path test: non-aligned dims, tiny tile prefs ----
    B2, K2, N2 = 40, 300, 200
    x2 = jax.random.normal(k_x2, (B2, K2), dtype=jnp.float32)
    w2 = 0.1 * jax.random.normal(k_w2, (N2, K2), dtype=jnp.float32)
    c2, p2, _, t2 = debug_rtp_linear(x2, w2, 0.25,
                                     tm_pref=16, tn_pref=128, tk_pref=128)
    c2 = jax.block_until_ready(c2)
    keep2 = jnp.abs(x2) >= 0.25
    c2_ref = jnp.where(keep2, x2, 0.0) @ w2.T
    assert jnp.allclose(c2, c2_ref, atol=1e-3, rtol=1e-4), "output mismatch (grid)"
    assert int(p2) == int(jnp.sum(~keep2)), "pruned mismatch (grid)"
    assert int(t2) == B2 * K2, "total mismatch (grid)"

    # ---- bf16 MXU fast path (v6e/v7x optimization): looser tolerance ----
    mod_bf16 = DebugLinear(in_features, out_features, bias=True, key=k_mod,
                           use_bf16_matmul=True)
    stats3 = {'pruned_in_training': 0, 'pruned_in_inference': 0, 'total': 0}
    c3 = jax.block_until_ready(mod_bf16.forward(x, threshold, stats3))
    assert jnp.allclose(c3, c_ref, atol=5e-2, rtol=5e-2), "output mismatch (bf16)"
    assert int(stats3['pruned_in_training']) == pruned_ref, "pruned mismatch (bf16)"

    print("KERNEL_OK")
</pallas_src>

<mosaic_0001>
module attributes {stable_mosaic.version = 11 : i64} {
  func.func @kernel(%arg0: i32, %arg1: i32, %arg2: i32, %arg3: memref<1xf32, #tpu.memory_space<smem>>, %arg4: memref<8x128xf32, #tpu.memory_space<vmem>>, %arg5: memref<128x128xf32, #tpu.memory_space<vmem>>, %arg6: memref<8x128xf32, #tpu.memory_space<vmem>>, %arg7: memref<8x128xf32, #tpu.memory_space<vmem>>) attributes {dimension_semantics = [#tpu.dimension_semantics<parallel>, #tpu.dimension_semantics<parallel>, #tpu.dimension_semantics<arbitrary>], iteration_bounds = array<i64: 1, 1, 1>, scalar_prefetch = 0 : i64, scratch_operands = 1 : i64, tpu.core_type = #tpu.core_type<tc>, window_params = [{transform_indices = @transform_0, window_bounds = array<i64: 1>}, {transform_indices = @transform_1, window_bounds = array<i64: 8, 128>}, {transform_indices = @transform_2, window_bounds = array<i64: 128, 128>}, {transform_indices = @transform_3, window_bounds = array<i64: 8, 128>}]} {
    %c0 = arith.constant 0 : index
    %0 = memref.load %arg3[%c0] : memref<1xf32, #tpu.memory_space<smem>>
    %c0_0 = arith.constant 0 : index
    %c0_1 = arith.constant 0 : index
    %1 = vector.load %arg4[%c0_0, %c0_1] : memref<8x128xf32, #tpu.memory_space<vmem>>, vector<8x128xf32>
    %2 = math.absf %1 : vector<8x128xf32>
    %3 = vector.broadcast %0 : f32 to vector<8x128xf32>
    %4 = arith.cmpf oge, %2, %3 : vector<8x128xf32>
    %cst = arith.constant 0.000000e+00 : f32
    %5 = vector.broadcast %cst : f32 to vector<8x128xf32>
    %6 = arith.select %4, %1, %5 : vector<8x128xi1>, vector<8x128xf32>
    %c0_2 = arith.constant 0 : index
    %c0_3 = arith.constant 0 : index
    %7 = vector.load %arg5[%c0_2, %c0_3] : memref<128x128xf32, #tpu.memory_space<vmem>>, vector<128x128xf32>
    %cst_4 = arith.constant dense<0.000000e+00> : vector<8x128xf32>
    %8 = tpu.matmul %6, %7, %cst_4 {dimension_numbers = #tpu.dot_dimension_numbers<[1], [0], [0], [1], [0, 0, 1, 1], [], []>} : vector<8x128xf32>, vector<128x128xf32>, vector<8x128xf32> -> vector<8x128xf32>
    %c0_i32 = arith.constant 0 : i32
    %9 = arith.cmpi eq, %arg2, %c0_i32 : i32
    %10 = arith.extui %9 : i1 to i32
    %c0_i32_5 = arith.constant 0 : i32
    %11 = arith.cmpi ne, %10, %c0_i32_5 : i32
    scf.if %11 {
      %c0_10 = arith.constant 0 : index
      %c0_11 = arith.constant 0 : index
      %18 = vector.load %arg7[%c0_10, %c0_11] : memref<8x128xf32, #tpu.memory_space<vmem>>, vector<8x128xf32>
      tpu.vector_store %arg7[%c0_10, %c0_11], %8 {strides = array<i32>} : memref<8x128xf32, #tpu.memory_space<vmem>>, vector<8x128xf32>,
    } else {
    }
    %c0_i32_6 = arith.constant 0 : i32
    %12 = arith.cmpi ne, %arg2, %c0_i32_6 : i32
    %13 = arith.extui %12 : i1 to i32
    %c0_i32_7 = arith.constant 0 : i32
    %14 = arith.cmpi ne, %13, %c0_i32_7 : i32
    scf.if %14 {
      %c0_10 = arith.constant 0 : index
      %c0_11 = arith.constant 0 : index
      %18 = vector.load %arg7[%c0_10, %c0_11] : memref<8x128xf32, #tpu.memory_space<vmem>>, vector<8x128xf32>
      %19 = arith.addf %18, %8 : vector<8x128xf32>
      %c0_12 = arith.constant 0 : index
      %c0_13 = arith.constant 0 : index
      %20 = vector.load %arg7[%c0_12, %c0_13] : memref<8x128xf32, #tpu.memory_space<vmem>>, vector<8x128xf32>
      tpu.vector_store %arg7[%c0_12, %c0_13], %19 {strides = array<i32>} : memref<8x128xf32, #tpu.memory_space<vmem>>, vector<8x128xf32>,
    } else {
    }
    %c0_i32_8 = arith.constant 0 : i32
    %15 = arith.cmpi eq, %arg2, %c0_i32_8 : i32
    %16 = arith.extui %15 : i1 to i32
    %c0_i32_9 = arith.constant 0 : i32
    %17 = arith.cmpi ne, %16, %c0_i32_9 : i32
    scf.if %17 {
      %c0_10 = arith.constant 0 : index
      %c0_11 = arith.constant 0 : index
      %18 = vector.load %arg7[%c0_10, %c0_11] : memref<8x128xf32, #tpu.memory_space<vmem>>, vector<8x128xf32>
      %c0_12 = arith.constant 0 : index
      %c0_13 = arith.constant 0 : index
      %19 = vector.load %arg6[%c0_12, %c0_13] : memref<8x128xf32, #tpu.memory_space<vmem>>, vector<8x128xf32>
      tpu.vector_store %arg6[%c0_12, %c0_13], %18 {strides = array<i32>} : memref<8x128xf32, #tpu.memory_space<vmem>>, vector<8x128xf32>,
    } else {
    }
    return
  }
  func.func @transform_0(%arg0: i32, %arg1: i32, %arg2: i32) -> i32 {
    %c0_i32 = arith.constant 0 : i32
    %c0_i32_0 = arith.constant 0 : i32
    return %c0_i32 : i32
  }
  func.func @transform_1(%arg0: i32, %arg1: i32, %arg2: i32) -> (i32, i32) {
    %c0_i32 = arith.constant 0 : i32
    return %arg0, %arg2 : i32, i32
  }
  func.func @transform_2(%arg0: i32, %arg1: i32, %arg2: i32) -> (i32, i32) {
    %c0_i32 = arith.constant 0 : i32
    return %arg2, %arg1 : i32, i32
  }
  func.func @transform_3(%arg0: i32, %arg1: i32, %arg2: i32) -> (i32, i32) {
    %c0_i32 = arith.constant 0 : i32
    return %arg0, %arg1 : i32, i32
  }
}

</mosaic_0001>

<llo_original>
// kernel: debug_rtp_linear_prepared.1
$region0: #{debug_rtp_linear_prepared.1}
  #allocation0 [shape = 'u32[]', space=smem, size = 0x4, offset = 0x4, fixed_abs, tag = 'smem constant byte address 0x4 - core index']
  #allocation1 [shape = 'u32[144,128]{1,0:T(1,128)}', space=vmem, size = 0x12000, scoped, tag = 'internal scratch']
  #allocation2 [shape = 'f32[8,128]{1,0:T(8,128)}', space=vmem, size = 0x1000, scoped, tag = 'scratch operand']
  #allocation3 [shape = 'f32[1]{0:T(128)S(6)}', space=smem, size = 0x200, scoped, tag = 'scoped memory for debug_rtp_linear_prepared.1']
  %s0 = inlined_call_operand.<no memory space> [shape: f32[1], index: 0, kind: input, shape index: {}]
  %s1 = inlined_call_operand.vmem [shape: f32[8,128], index: 1, kind: input, shape index: {}]
  %s2 = inlined_call_operand.hbm [shape: f32[128,128], index: 2, kind: input, shape index: {}]
  %s3 = inlined_call_operand.hbm [shape: f32[8,128], index: 3, kind: output, shape index: {}]
  %s4 = sld [smem:[#allocation0]]
  $region38: #{debug_rtp_linear_prepared.1} parent=0
    _
  %s6 = ssub.s32 1, %s4
  %s7 = scalar_select 0, %s6, %s4
  %8 = sst [smem:[#allocation3]] %s0
  $region1: #{debug_rtp_linear_prepared.1} parent=0
    #allocation4 [shape = 'u8[65536]{0}', space=vmem, size = 0x10000, scoped, tag = 'input window, operand 2, single buffered']
    #allocation5 [shape = 's32[1]{0}', space=sflag, size = 0x4, scoped, tag = 'scoped memory for debug_rtp_linear_prepared.1']
    #allocation6 [shape = 's32[1]{0}', space=sflag, size = 0x4, scoped, tag = 'scoped memory for debug_rtp_linear_prepared.1']
    #allocation7 [shape = 'u8[4096]{0}', space=vmem, size = 0x1000, scoped, tag = 'output window, operand 0, single buffered']
    %9 = vsyncpa [#allocation5], 0
    %10 = vsyncpa [#allocation6], 0
    // Predicated region
    $region2: #{debug_rtp_linear_prepared.1} parent=1 // pred_check
      _
    $region3: #{debug_rtp_linear_prepared.1} parent=1 // pred_check_branch
      %12 = sbr.rel (0) target = $region5
    $region4: #{debug_rtp_linear_prepared.1} parent=1 // pred_region
      _
    $region5: #{debug_rtp_linear_prepared.1} parent=1 // pred_fallthru
      _
    // Predicated region
    $region6: #{debug_rtp_linear_prepared.1} parent=1 // pred_check
      _
    $region7: #{debug_rtp_linear_prepared.1} parent=1 // pred_check_branch
      %14 = sbr.rel (0) target = $region9
    $region8: #{debug_rtp_linear_prepared.1} parent=1 // pred_region
      _
    $region9: #{debug_rtp_linear_prepared.1} parent=1 // pred_fallthru
      _
    // Predicated region
    $region10: #{debug_rtp_linear_prepared.1} parent=1 // pred_check
      _
    $region11: #{debug_rtp_linear_prepared.1} parent=1 // pred_check_branch
      %16 = sbr.rel (0) target = $region13
    $region12: #{debug_rtp_linear_prepared.1} parent=1 // pred_region
      %s18 = ssub.s32 2048, 2048
      %19 = vsyncadd [#allocation5], %s18
      %s20 = sshll.u32 [#allocation4], 4
      %s21 = int_to_ptr.vmem [resolvable:$true] %s20
      %26 = dma.hbm_to_vmem [thread:$0]  %s2, 2048, %s21, [#allocation5], 128, 128, 8
    $region13: #{debug_rtp_linear_prepared.1} parent=1 // pred_fallthru
      _
    // Predicated region
    $region14: #{debug_rtp_linear_prepared.1} parent=1 // pred_check
      _
    $region15: #{debug_rtp_linear_prepared.1} parent=1 // pred_check_branch
      %28 = sbr.rel (0) target = $region17
    $region16: #{debug_rtp_linear_prepared.1} parent=1 // pred_region
      %29 = dma.done [#allocation5], 2048
    $region17: #{debug_rtp_linear_prepared.1} parent=1 // pred_fallthru
      _
    %s30 = sld [smem:[#allocation3]]
    %v31 = vld [vmem:[%s1] sm:$0xff]
    %v32 = vand.u32 2147483647, %v31
    %v33 = vstv %s30
    %vm34 = vcmp.ge.f32.partialorder %v32, %v33
    %v35 = vsel %vm34, %v31, 0.0
    %v36 = vld [vmem:[#allocation4] sm:$0xff]
    %v37 = vld [vmem:[#allocation4 + $0x8] sm:$0xff]
    %v38 = vld [vmem:[#allocation4 + $0x10] sm:$0xff]
    %v39 = vld [vmem:[#allocation4 + $0x18] sm:$0xff]
    %v40 = vld [vmem:[#allocation4 + $0x20] sm:$0xff]
    %v41 = vld [vmem:[#allocation4 + $0x28] sm:$0xff]
    %v42 = vld [vmem:[#allocation4 + $0x30] sm:$0xff]
    %v43 = vld [vmem:[#allocation4 + $0x38] sm:$0xff]
    %v44 = vld [vmem:[#allocation4 + $0x40] sm:$0xff]
    %v45 = vld [vmem:[#allocation4 + $0x48] sm:$0xff]
    %v46 = vld [vmem:[#allocation4 + $0x50] sm:$0xff]
    %v47 = vld [vmem:[#allocation4 + $0x58] sm:$0xff]
    %v48 = vld [vmem:[#allocation4 + $0x60] sm:$0xff]
    %v49 = vld [vmem:[#allocation4 + $0x68] sm:$0xff]
    %v50 = vld [vmem:[#allocation4 + $0x70] sm:$0xff]
    %v51 = vld [vmem:[#allocation4 + $0x78] sm:$0xff]
    %52 = vmatprep.subr.mxu0 0.0
    %53 = vmatpush1.msra.mxu0 %v36
    %54 = vmatprep.subr.mxu0 0.0
    %55 = vmatpush1.msra.mxu0 %v37
    %56 = vmatprep.subr.mxu0 0.0
    %57 = vmatpush1.msra.mxu0 %v38
    %58 = vmatprep.subr.mxu0 0.0
    %59 = vmatpush1.msra.mxu0 %v39
    %60 = vmatprep.subr.mxu0 0.0
    %61 = vmatpush1.msra.mxu0 %v40
    %62 = vmatprep.subr.mxu0 0.0
    %63 = vmatpush1.msra.mxu0 %v41
    %64 = vmatprep.subr.mxu0 0.0
    %65 = vmatpush1.msra.mxu0 %v42
    %66 = vmatprep.subr.mxu0 0.0
    %67 = vmatpush1.msra.mxu0 %v43
    %68 = vmatprep.subr.mxu0 0.0
    %69 = vmatpush1.msra.mxu0 %v44
    %70 = vmatprep.subr.mxu0 0.0
    %71 = vmatpush1.msra.mxu0 %v45
    %72 = vmatprep.subr.mxu0 0.0
    %73 = vmatpush1.msra.mxu0 %v46
    %74 = vmatprep.subr.mxu0 0.0
    %75 = vmatpush1.msra.mxu0 %v47
    %76 = vmatprep.subr.mxu0 0.0
    %77 = vmatpush1.msra.mxu0 %v48
    %78 = vmatprep.subr.mxu0 0.0
    %79 = vmatpush1.msra.mxu0 %v49
    %80 = vmatprep.subr.mxu0 0.0
    %81 = vmatpush1.msra.mxu0 %v50
    %82 = vmatprep.subr.mxu0 0.0
    %83 = vmatpush1.msra.mxu0 %v51
    %84 = vmatprep.subr.mxu0 0.0
    %85 = vmatpush1.msra.mxu0 0.0
    %86 = vmatprep.subr.mxu0 0.0
    %87 = vmatpush1.msra.mxu0 0.0
    %88 = vmatprep.subr.mxu0 0.0
    %89 = vmatpush1.msra.mxu0 0.0
    %90 = vmatprep.subr.mxu0 0.0
    %91 = vmatpush1.msra.mxu0 0.0
    %92 = vmatprep.subr.mxu0 0.0
    %93 = vmatpush1.msra.mxu0 0.0
    %94 = vmatprep.subr.mxu0 0.0
    %95 = vmatpush1.msra.mxu0 0.0
    %96 = vmatprep.subr.mxu0 0.0
    %97 = vmatpush1.msra.mxu0 0.0
    %98 = vmatprep.subr.mxu0 0.0
    %99 = vmatpush1.msra.mxu0 0.0
    %100 = vmatprep.subr.mxu0 0.0
    %101 = vmatpush1.msra.mxu0 0.0
    %102 = vmatprep.subr.mxu0 0.0
    %103 = vmatpush1.msra.mxu0 0.0
    %104 = vmatprep.subr.mxu0 0.0
    %105 = vmatpush1.msra.mxu0 0.0
    %106 = vmatprep.subr.mxu0 0.0
    %107 = vmatpush1.msra.mxu0 0.0
    %108 = vmatprep.subr.mxu0 0.0
    %109 = vmatpush1.msra.mxu0 0.0
    %110 = vmatprep.subr.mxu0 0.0
    %111 = vmatpush1.msra.mxu0 0.0
    %112 = vmatprep.subr.mxu0 0.0
    %113 = vmatpush1.msra.mxu0 0.0
    %114 = vmatprep.subr.mxu0 0.0
    %115 = vmatpush1.msra.mxu0 0.0
    %116 = vmatprep.mubr.f32.mxu0 0.0
    %117 = vmatmul.mubr.f32.gmra.mrb[0].mxu0 %v35
    %v118 = vpop.f32.mrb[0].mxu0
    %v119 = vadd.f32 0.0, %v118
    %v120 = vpop.f32.mrb[0].mxu0
    %121 = vdwg.mxu0
    %p122 = scmp.eq.s32.totalorder 0, 0
    // Predicated region
    $region18: #{debug_rtp_linear_prepared.1} parent=1 // pred_check
      %p123 = pneg %p122
    $region19: #{debug_rtp_linear_prepared.1} parent=1 // pred_check_branch
      %125 = sbr.rel (%p123) target = $region21
    $region20: #{debug_rtp_linear_prepared.1} parent=1 // pred_region
      %126 = vst [vmem:[#allocation2] sm:$0xff] %v119
    $region21: #{debug_rtp_linear_prepared.1} parent=1 // pred_fallthru
      _
    %p127 = scmp.ne.s32.totalorder 0, 0
    // Predicated region
    $region22: #{debug_rtp_linear_prepared.1} parent=1 // pred_check
      %p128 = pneg %p127
    $region23: #{debug_rtp_linear_prepared.1} parent=1 // pred_check_branch
      %130 = sbr.rel (%p128) target = $region25
    $region24: #{debug_rtp_linear_prepared.1} parent=1 // pred_region
      %v131 = vld [vmem:[#allocation2] sm:$0xff]
      %v132 = vadd.f32 %v131, %v119
      %133 = vst [vmem:[#allocation2] sm:$0xff] %v132
    $region25: #{debug_rtp_linear_prepared.1} parent=1 // pred_fallthru
      _
    // Predicated region
    $region26: #{debug_rtp_linear_prepared.1} parent=1 // pred_check
      %p134 = pneg %p122
    $region27: #{debug_rtp_linear_prepared.1} parent=1 // pred_check_branch
      %136 = sbr.rel (%p134) target = $region29
    $region28: #{debug_rtp_linear_prepared.1} parent=1 // pred_region
      %v137 = vld [vmem:[#allocation2] sm:$0xff]
      %138 = vst [vmem:[#allocation7] sm:$0xff] %v137
    $region29: #{debug_rtp_linear_prepared.1} parent=1 // pred_fallthru
      _
    // Predicated region
    $region30: #{debug_rtp_linear_prepared.1} parent=1 // pred_check
      _
    $region31: #{debug_rtp_linear_prepared.1} parent=1 // pred_check_branch
      %140 = sbr.rel (0) target = $region33
    $region32: #{debug_rtp_linear_prepared.1} parent=1 // pred_region
      %s142 = ssub.s32 128, 128
      %143 = vsyncadd [#allocation6], %s142
      %s145 = sshll.u32 [#allocation7], 4
      %s146 = int_to_ptr.vmem [resolvable:$true] %s145
      %148 = dma.vmem_to_hbm [thread:$0]  %s146, 128, %s3, [#allocation6]
    $region33: #{debug_rtp_linear_prepared.1} parent=1 // pred_fallthru
      _
    // Predicated region
    $region34: #{debug_rtp_linear_prepared.1} parent=1 // pred_check
      _
    $region35: #{debug_rtp_linear_prepared.1} parent=1 // pred_check_branch
      %150 = sbr.rel (0) target = $region37
    $region36: #{debug_rtp_linear_prepared.1} parent=1 // pred_region
      %151 = dma.done [#allocation6], 128
    $region37: #{debug_rtp_linear_prepared.1} parent=1 // pred_fallthru
      _
    %152 = vsyncpa [#allocation5], 1
    %153 = vsyncpa [#allocation6], 1

</llo_original>
